<compile_context>
chip_gen: v6e
topology: v6e:2x2x1
jax: 0.10.0
libtpu: 0.0.40
codegen_flags: <defaults>
</compile_context>

<pallas_src>
import jax
import jax.numpy as jnp
from jax.experimental import pallas as pl
from jax.experimental.pallas import tpu as pltpu


def _critic_kernel(x_ref, w1_ref, w2p_ref, small_ref, out_ref):
    x = x_ref[...]                                   # (TB, state_dim)

    b1 = small_ref[0:1, :]                           # (1, 128)
    b2 = small_ref[1:2, :]                           # (1, 128)  cols 64..127 are zero
    w3 = small_ref[2:3, :]                           # (1, 128)  cols 64..127 are zero
    b3 = small_ref[3:4, 0:1]                         # (1, 1)

    # layer 1: (TB, state_dim) @ (state_dim, 128) -> MXU
    h1 = jnp.dot(x, w1_ref[...], preferred_element_type=jnp.float32) + b1
    h1 = jnp.maximum(h1, 0.0)                        # ReLU, (TB, 128)

    # layer 2: (TB, 128) @ (128, 128 zero-padded) -> MXU; padded cols give relu(0)=0
    h2 = jnp.dot(h1, w2p_ref[...], preferred_element_type=jnp.float32) + b2
    h2 = jnp.maximum(h2, 0.0)                        # ReLU, (TB, 128)

    # layer 3 (out_features == 1): VPU multiply + XLU lane reduction instead of an
    # N=1 MXU matmul (padded w3 columns are zero, so they contribute nothing).
    v = jnp.sum(h2 * w3, axis=-1, keepdims=True) + b3    # (TB, 1)
    out_ref[...] = v.astype(out_ref.dtype)


def critic_forward(state, params, *, tile_b=512):
    """state: (B, state_dim) f32. params: dict with 'w1', 'w2p', 'small' (packed)."""
    B, sd = state.shape
    w1, w2p, small = params["w1"], params["w2p"], params["small"]

    # Sublane-aligned batch tile; pad B up to a multiple of TB (tail rows sliced off).
    TB = min(tile_b, B)
    TB = max(8, ((TB + 7) // 8) * 8)
    Bp = ((B + TB - 1) // TB) * TB
    if Bp != B:
        state = jnp.pad(state, ((0, Bp - B), (0, 0)))
    grid = (Bp // TB,)

    # Advisory cost estimate for XLA's scheduler.
    flops = 2 * Bp * (sd * 128 + 128 * 128 + 128)
    bytes_accessed = 4 * (Bp * sd + w1.size + w2p.size + small.size + Bp)
    cost = pl.CostEstimate(flops=flops, transcendentals=0,
                           bytes_accessed=bytes_accessed)

    # Explicit VMEM budget: double-buffered state/out tiles + resident weights +
    # f32 intermediates, with generous headroom.
    weight_bytes = 4 * (w1.size + w2p.size + small.size)
    vmem_limit = int(2 * (TB * sd * 4 + TB * 4)        # state + out, double-buffered
                     + 2 * weight_bytes                # resident params (conservative)
                     + 2 * TB * 128 * 4                # h1 / h2 intermediates
                     + (8 << 20))                      # headroom

    out = pl.pallas_call(
        _critic_kernel,
        out_shape=jax.ShapeDtypeStruct((Bp, 1), jnp.float32),
        grid_spec=pltpu.PrefetchScalarGridSpec(
            num_scalar_prefetch=0,
            grid=grid,
            in_specs=[
                pl.BlockSpec((TB, sd), lambda i: (i, 0)),      # state: tiled over batch
                pl.BlockSpec((sd, 128), lambda i: (0, 0)),     # w1: resident
                pl.BlockSpec((128, 128), lambda i: (0, 0)),    # w2 (zero-padded): resident
                pl.BlockSpec((4, 128), lambda i: (0, 0)),      # packed b1/b2/w3/b3: resident
            ],
            out_specs=pl.BlockSpec((TB, 1), lambda i: (i, 0)),
        ),
        compiler_params=pltpu.CompilerParams(
            dimension_semantics=("parallel",),                 # shards batch across TCs (v7x)
            vmem_limit_bytes=vmem_limit,
        ),
        cost_estimate=cost,
    )(state, w1, w2p, small)
    return out[:B]


def init_critic_params(key, state_dim):
    """Init mimicking nn.Linear's U(-1/sqrt(fan_in), 1/sqrt(fan_in)), packed for the kernel."""
    ks = jax.random.split(key, 6)

    def linear(kw, kb, fan_in, fan_out):
        bound = 1.0 / (fan_in ** 0.5)
        # stored (in, out) so kernel does x @ W (equivalent to PyTorch x @ W.T)
        w = jax.random.uniform(kw, (fan_in, fan_out), jnp.float32, -bound, bound)
        b = jax.random.uniform(kb, (fan_out,), jnp.float32, -bound, bound)
        return w, b

    w1, b1 = linear(ks[0], ks[1], state_dim, 128)
    w2, b2 = linear(ks[2], ks[3], 128, 64)
    w3, b3 = linear(ks[4], ks[5], 64, 1)

    # Zero-pad layer 2 to 128 output lanes (padded columns stay exactly zero through ReLU).
    w2p = jnp.zeros((128, 128), jnp.float32).at[:, :64].set(w2)

    # Pack all small params into one lane-dense (4, 128) array: one DMA instead of four.
    small = jnp.zeros((4, 128), jnp.float32)
    small = small.at[0, :].set(b1)          # b1
    small = small.at[1, :64].set(b2)        # b2 (padded)
    small = small.at[2, :64].set(w3[:, 0])  # w3 column as a row (padded)
    small = small.at[3, 0].set(b3[0])       # b3 scalar
    return {"w1": w1, "w2p": w2p, "small": small}


def critic_reference(state, params):
    """Pure-JAX reference of the same forward pass (unpacks the packed params)."""
    w1 = params["w1"]
    b1 = params["small"][0, :]
    w2 = params["w2p"][:, :64]
    b2 = params["small"][1, :64]
    w3 = params["small"][2, :64][:, None]
    b3 = params["small"][3, 0]
    h1 = jnp.maximum(state @ w1 + b1, 0.0)
    h2 = jnp.maximum(h1 @ w2 + b2, 0.0)
    return h2 @ w3 + b3


if __name__ == "__main__":
    key = jax.random.PRNGKey(0)
    k_params, k_state = jax.random.split(key)

    batch = 8
    state_dim = 32

    params = init_critic_params(k_params, state_dim)
    state = jax.random.normal(k_state, (batch, state_dim), jnp.float32)

    value = critic_forward(state, params)
    value = jax.block_until_ready(value)

    ref = critic_reference(state, params)
    assert value.shape == (batch, 1), value.shape
    assert jnp.allclose(value, ref, atol=1e-4, rtol=1e-4), (value, ref)

    print("KERNEL_OK")
</pallas_src>

<mosaic_0001>
module attributes {stable_mosaic.version = 11 : i64} {
  func.func @_critic_kernel(%arg0: i32, %arg1: memref<8x32xf32, #tpu.memory_space<vmem>>, %arg2: memref<32x128xf32, #tpu.memory_space<vmem>>, %arg3: memref<128x128xf32, #tpu.memory_space<vmem>>, %arg4: memref<4x128xf32, #tpu.memory_space<vmem>>, %arg5: memref<8x1xf32, #tpu.memory_space<vmem>>) attributes {dimension_semantics = [#tpu.dimension_semantics<parallel>], iteration_bounds = array<i64: 1>, scalar_prefetch = 0 : i64, scratch_operands = 0 : i64, tpu.core_type = #tpu.core_type<tc>, window_params = [{transform_indices = @transform_0, window_bounds = array<i64: 8, 32>}, {pipeline_mode = #tpu.pipeline_mode<synchronous>, transform_indices = @transform_1, window_bounds = array<i64: 32, 128>}, {pipeline_mode = #tpu.pipeline_mode<synchronous>, transform_indices = @transform_2, window_bounds = array<i64: 128, 128>}, {pipeline_mode = #tpu.pipeline_mode<synchronous>, transform_indices = @transform_3, window_bounds = array<i64: 4, 128>}, {transform_indices = @transform_4, window_bounds = array<i64: 8, 1>}]} {
    %c0 = arith.constant 0 : index
    %c0_0 = arith.constant 0 : index
    %0 = vector.load %arg1[%c0, %c0_0] : memref<8x32xf32, #tpu.memory_space<vmem>>, vector<8x32xf32>
    %c0_1 = arith.constant 0 : index
    %c0_2 = arith.constant 0 : index
    %1 = vector.load %arg4[%c0_1, %c0_2] : memref<4x128xf32, #tpu.memory_space<vmem>>, vector<1x128xf32>
    %c1 = arith.constant 1 : index
    %c0_3 = arith.constant 0 : index
    %2 = vector.load %arg4[%c1, %c0_3] : memref<4x128xf32, #tpu.memory_space<vmem>>, vector<1x128xf32>
    %c2 = arith.constant 2 : index
    %c0_4 = arith.constant 0 : index
    %3 = vector.load %arg4[%c2, %c0_4] : memref<4x128xf32, #tpu.memory_space<vmem>>, vector<1x128xf32>
    %c3 = arith.constant 3 : index
    %c0_5 = arith.constant 0 : index
    %4 = vector.load %arg4[%c3, %c0_5] : memref<4x128xf32, #tpu.memory_space<vmem>>, vector<1x1xf32>
    %c0_6 = arith.constant 0 : index
    %c0_7 = arith.constant 0 : index
    %5 = vector.load %arg2[%c0_6, %c0_7] : memref<32x128xf32, #tpu.memory_space<vmem>>, vector<32x128xf32>
    %cst = arith.constant dense<0.000000e+00> : vector<8x128xf32>
    %6 = tpu.matmul %0, %5, %cst {dimension_numbers = #tpu.dot_dimension_numbers<[1], [0], [0], [1], [0, 0, 1, 1], [], []>} : vector<8x32xf32>, vector<32x128xf32>, vector<8x128xf32> -> vector<8x128xf32>
    %7 = vector.broadcast %1 : vector<1x128xf32> to vector<8x128xf32>
    %8 = arith.addf %6, %7 : vector<8x128xf32>
    %cst_8 = arith.constant 0.000000e+00 : f32
    %9 = vector.broadcast %cst_8 : f32 to vector<8x128xf32>
    %10 = arith.maximumf %8, %9 : vector<8x128xf32>
    %c0_9 = arith.constant 0 : index
    %c0_10 = arith.constant 0 : index
    %11 = vector.load %arg3[%c0_9, %c0_10] : memref<128x128xf32, #tpu.memory_space<vmem>>, vector<128x128xf32>
    %cst_11 = arith.constant dense<0.000000e+00> : vector<8x128xf32>
    %12 = tpu.matmul %10, %11, %cst_11 {dimension_numbers = #tpu.dot_dimension_numbers<[1], [0], [0], [1], [0, 0, 1, 1], [], []>} : vector<8x128xf32>, vector<128x128xf32>, vector<8x128xf32> -> vector<8x128xf32>
    %13 = vector.broadcast %2 : vector<1x128xf32> to vector<8x128xf32>
    %14 = arith.addf %12, %13 : vector<8x128xf32>
    %cst_12 = arith.constant 0.000000e+00 : f32
    %15 = vector.broadcast %cst_12 : f32 to vector<8x128xf32>
    %16 = arith.maximumf %14, %15 : vector<8x128xf32>
    %17 = vector.broadcast %3 : vector<1x128xf32> to vector<8x128xf32>
    %18 = arith.mulf %16, %17 : vector<8x128xf32>
    %cst_13 = arith.constant dense<0.000000e+00> : vector<8xf32>
    %19 = vector.multi_reduction <add>, %18, %cst_13 [1] : vector<8x128xf32> to vector<8xf32>
    %20 = vector.shape_cast %19 : vector<8xf32> to vector<8x1xf32>
    %21 = vector.broadcast %4 : vector<1x1xf32> to vector<8x1xf32>
    %22 = arith.addf %20, %21 : vector<8x1xf32>
    %c0_14 = arith.constant 0 : index
    %c0_15 = arith.constant 0 : index
    %23 = vector.load %arg5[%c0_14, %c0_15] : memref<8x1xf32, #tpu.memory_space<vmem>>, vector<8x1xf32>
    tpu.vector_store %arg5[%c0_14, %c0_15], %22 {strides = array<i32>} : memref<8x1xf32, #tpu.memory_space<vmem>>, vector<8x1xf32>,
    return
  }
  func.func @transform_0(%arg0: i32) -> (i32, i32) {
    %c0_i32 = arith.constant 0 : i32
    %c0_i32_0 = arith.constant 0 : i32
    return %arg0, %c0_i32 : i32, i32
  }
  func.func @transform_1(%arg0: i32) -> (i32, i32) {
    %c0_i32 = arith.constant 0 : i32
    %c0_i32_0 = arith.constant 0 : i32
    %c0_i32_1 = arith.constant 0 : i32
    return %c0_i32, %c0_i32_0 : i32, i32
  }
  func.func @transform_2(%arg0: i32) -> (i32, i32) {
    %c0_i32 = arith.constant 0 : i32
    %c0_i32_0 = arith.constant 0 : i32
    %c0_i32_1 = arith.constant 0 : i32
    return %c0_i32, %c0_i32_0 : i32, i32
  }
  func.func @transform_3(%arg0: i32) -> (i32, i32) {
    %c0_i32 = arith.constant 0 : i32
    %c0_i32_0 = arith.constant 0 : i32
    %c0_i32_1 = arith.constant 0 : i32
    return %c0_i32, %c0_i32_0 : i32, i32
  }
  func.func @transform_4(%arg0: i32) -> (i32, i32) {
    %c0_i32 = arith.constant 0 : i32
    %c0_i32_0 = arith.constant 0 : i32
    return %arg0, %c0_i32 : i32, i32
  }
}

</mosaic_0001>

<llo_original>
// kernel: tpu_custom_call.1
$region0: #{tpu_custom_call.1}
  #allocation0 [shape = 'u32[]', space=smem, size = 0x4, offset = 0x4, fixed_abs, tag = 'smem constant byte address 0x4 - core index']
  #allocation1 [shape = 'u32[144,128]{1,0:T(1,128)}', space=vmem, size = 0x12000, scoped, tag = 'internal scratch']
  %s0 = inlined_call_operand.hbm [shape: f32[8,32], index: 0, kind: input, shape index: {}]
  %s1 = inlined_call_operand.hbm [shape: f32[32,128], index: 1, kind: input, shape index: {}]
  %s2 = inlined_call_operand.hbm [shape: f32[128,128], index: 2, kind: input, shape index: {}]
  %s3 = inlined_call_operand.vmem [shape: f32[4,128], index: 3, kind: input, shape index: {}]
  %s4 = inlined_call_operand.vmem [shape: f32[8,1], index: 4, kind: output, shape index: {}]
  %s5 = sld [smem:[#allocation0]]
  $region38: #{tpu_custom_call.1} parent=0
    _
  %s7 = ssub.s32 1, %s5
  %s8 = scalar_select 0, %s7, %s5
  $region1: #{tpu_custom_call.1} parent=0
    #allocation2 [shape = 'u8[4096]{0}', space=vmem, size = 0x1000, scoped, tag = 'input window, operand 0, single buffered']
    #allocation3 [shape = 's32[1]{0}', space=sflag, size = 0x4, scoped, tag = 'scoped memory for tpu_custom_call.1']
    #allocation4 [shape = 'u8[16384]{0}', space=vmem, size = 0x4000, scoped, tag = 'input window, operand 1, single buffered']
    #allocation5 [shape = 's32[1]{0}', space=sflag, size = 0x4, scoped, tag = 'scoped memory for tpu_custom_call.1']
    #allocation6 [shape = 'u8[65536]{0}', space=vmem, size = 0x10000, scoped, tag = 'input window, operand 2, single buffered']
    %9 = vsyncpa [#allocation3], 0
    %10 = vsyncpa [#allocation5], 0
    // Predicated region
    $region2: #{tpu_custom_call.1} parent=1 // pred_check
      _
    $region3: #{tpu_custom_call.1} parent=1 // pred_check_branch
      %12 = sbr.rel (0) target = $region5
    $region4: #{tpu_custom_call.1} parent=1 // pred_region
      %s14 = ssub.s32 128, 128
      %15 = vsyncadd [#allocation3], %s14
      %s17 = sshll.u32 [#allocation2], 4
      %s18 = int_to_ptr.vmem [resolvable:$true] %s17
      %20 = dma.hbm_to_vmem [thread:$0]  %s0, 128, %s18, [#allocation3]
    $region5: #{tpu_custom_call.1} parent=1 // pred_fallthru
      _
    // Predicated region
    $region6: #{tpu_custom_call.1} parent=1 // pred_check
      _
    $region7: #{tpu_custom_call.1} parent=1 // pred_check_branch
      %22 = sbr.rel (0) target = $region9
    $region8: #{tpu_custom_call.1} parent=1 // pred_region
      %s24 = ssub.s32 512, 512
      %25 = vsyncadd [#allocation5], %s24
      %s26 = sshll.u32 [#allocation4], 4
      %s27 = int_to_ptr.vmem [resolvable:$true] %s26
      %32 = dma.hbm_to_vmem [thread:$0]  %s1, 512, %s27, [#allocation5], 128, 128, 8
    $region9: #{tpu_custom_call.1} parent=1 // pred_fallthru
      _
    // Predicated region
    $region10: #{tpu_custom_call.1} parent=1 // pred_check
      _
    $region11: #{tpu_custom_call.1} parent=1 // pred_check_branch
      %34 = sbr.rel (0) target = $region13
    $region12: #{tpu_custom_call.1} parent=1 // pred_region
      %s36 = ssub.s32 2048, 2048
      %37 = vsyncadd [#allocation5], %s36
      %s38 = sshll.u32 [#allocation6], 4
      %s39 = int_to_ptr.vmem [resolvable:$true] %s38
      %44 = dma.hbm_to_vmem [thread:$0]  %s2, 2048, %s39, [#allocation5], 128, 128, 8
    $region13: #{tpu_custom_call.1} parent=1 // pred_fallthru
      _
    // Predicated region
    $region14: #{tpu_custom_call.1} parent=1 // pred_check
      _
    $region15: #{tpu_custom_call.1} parent=1 // pred_check_branch
      %46 = sbr.rel (0) target = $region17
    $region16: #{tpu_custom_call.1} parent=1 // pred_region
      _
    $region17: #{tpu_custom_call.1} parent=1 // pred_fallthru
      _
    // Predicated region
    $region18: #{tpu_custom_call.1} parent=1 // pred_check
      _
    $region19: #{tpu_custom_call.1} parent=1 // pred_check_branch
      %48 = sbr.rel (0) target = $region21
    $region20: #{tpu_custom_call.1} parent=1 // pred_region
      %49 = dma.done [#allocation3], 128
    $region21: #{tpu_custom_call.1} parent=1 // pred_fallthru
      _
    // Predicated region
    $region22: #{tpu_custom_call.1} parent=1 // pred_check
      _
    $region23: #{tpu_custom_call.1} parent=1 // pred_check_branch
      %51 = sbr.rel (0) target = $region25
    $region24: #{tpu_custom_call.1} parent=1 // pred_region
      %52 = dma.done [#allocation5], 512
    $region25: #{tpu_custom_call.1} parent=1 // pred_fallthru
      _
    // Predicated region
    $region26: #{tpu_custom_call.1} parent=1 // pred_check
      _
    $region27: #{tpu_custom_call.1} parent=1 // pred_check_branch
      %54 = sbr.rel (0) target = $region29
    $region28: #{tpu_custom_call.1} parent=1 // pred_region
      %55 = dma.done [#allocation5], 2048
    $region29: #{tpu_custom_call.1} parent=1 // pred_fallthru
      _
    %v56 = vld [vmem:[#allocation2] sm:$0xff]
    %v57 = vld [vmem:[%s3] sm:$0x1]
    %v58 = vld [vmem:[%s3 + $0x1] sm:$0x1]
    %v59 = vld [vmem:[%s3 + $0x2] sm:$0x1]
    %v60 = vld [vmem:[%s3 + $0x3] sm:$0x1]
    %v61 = vld [vmem:[#allocation4] sm:$0xff]
    %v62 = vld [vmem:[#allocation4 + $0x8] sm:$0xff]
    %v63 = vld [vmem:[#allocation4 + $0x10] sm:$0xff]
    %v64 = vld [vmem:[#allocation4 + $0x18] sm:$0xff]
    %v65 = vlaneseq
    %v66 = vshrl.u32 %v65, 7
    %v67 = vsub.s32 0, %v66
    %v68 = vrot.slane %v57, %v67
    %vm69 = vcmask 261120
    %v71 = vsel %vm69, %v56, 0
    %73 = vmatprep.subr.mxu0 0.0
    %74 = vmatpush1.msra.mxu0 0.0
    %75 = vmatprep.subr.mxu0 0.0
    %76 = vmatpush1.msra.mxu0 0.0
    %77 = vmatprep.subr.mxu0 0.0
    %78 = vmatpush1.msra.mxu0 0.0
    %79 = vmatprep.subr.mxu0 0.0
    %80 = vmatpush1.msra.mxu0 0.0
    %81 = vmatprep.subr.mxu0 0.0
    %82 = vmatpush1.msra.mxu0 0.0
    %83 = vmatprep.subr.mxu0 0.0
    %84 = vmatpush1.msra.mxu0 0.0
    %85 = vmatprep.subr.mxu0 0.0
    %86 = vmatpush1.msra.mxu0 0.0
    %87 = vmatprep.subr.mxu0 0.0
    %88 = vmatpush1.msra.mxu0 0.0
    %89 = vmatprep.subr.mxu0 0.0
    %90 = vmatpush1.msra.mxu0 0.0
    %91 = vmatprep.subr.mxu0 0.0
    %92 = vmatpush1.msra.mxu0 0.0
    %93 = vmatprep.subr.mxu0 0.0
    %94 = vmatpush1.msra.mxu0 0.0
    %95 = vmatprep.subr.mxu0 0.0
    %96 = vmatpush1.msra.mxu0 0.0
    %97 = vmatprep.subr.mxu0 0.0
    %98 = vmatpush1.msra.mxu0 %v64
    %99 = vmatprep.subr.mxu0 0.0
    %100 = vmatpush1.msra.mxu0 %v63
    %101 = vmatprep.subr.mxu0 0.0
    %102 = vmatpush1.msra.mxu0 %v62
    %103 = vmatprep.subr.mxu0 0.0
    %104 = vmatpush1.msra.mxu0 %v61
    %105 = vmatprep.subr.mxu0 0.0
    %106 = vmatpush2.msra.mxu0 0.0
    %107 = vmatprep.subr.mxu0 0.0
    %108 = vmatpush2.msra.mxu0 0.0
    %109 = vmatprep.subr.mxu0 0.0
    %110 = vmatpush2.msra.mxu0 0.0
    %111 = vmatprep.subr.mxu0 0.0
    %112 = vmatpush2.msra.mxu0 0.0
    %113 = vmatprep.subr.mxu0 0.0
    %114 = vmatpush2.msra.mxu0 0.0
    %115 = vmatprep.subr.mxu0 0.0
    %116 = vmatpush2.msra.mxu0 0.0
    %117 = vmatprep.subr.mxu0 0.0
    %118 = vmatpush2.msra.mxu0 0.0
    %119 = vmatprep.subr.mxu0 0.0
    %120 = vmatpush2.msra.mxu0 0.0
    %121 = vmatprep.subr.mxu0 0.0
    %122 = vmatpush2.msra.mxu0 0.0
    %123 = vmatprep.subr.mxu0 0.0
    %124 = vmatpush2.msra.mxu0 0.0
    %125 = vmatprep.subr.mxu0 0.0
    %126 = vmatpush2.msra.mxu0 0.0
    %127 = vmatprep.subr.mxu0 0.0
    %128 = vmatpush2.msra.mxu0 0.0
    %129 = vmatprep.subr.mxu0 0.0
    %130 = vmatpush2.msra.mxu0 0.0
    %131 = vmatprep.subr.mxu0 0.0
    %132 = vmatpush2.msra.mxu0 0.0
    %133 = vmatprep.subr.mxu0 0.0
    %134 = vmatpush2.msra.mxu0 0.0
    %135 = vmatprep.subr.mxu0 0.0
    %136 = vmatpush2.msra.mxu0 0.0
    %137 = vmatprep.mubr.f32.mxu0 0.0
    %138 = vmatmul.mubr.f32.gmra.mxu0 %v71
    %v139 = vpop.f32.mrf.mxu0
    %v140 = vadd.f32 %v68, %v139
    %v141 = vpop.f32.mrf.mxu0
    %142 = vdwg.mxu0
    %v143 = vmax.f32 %v140, 0.0
    %v144 = vld [vmem:[#allocation6] sm:$0xff]
    %v145 = vld [vmem:[#allocation6 + $0x8] sm:$0xff]
    %v146 = vld [vmem:[#allocation6 + $0x10] sm:$0xff]
    %v147 = vld [vmem:[#allocation6 + $0x18] sm:$0xff]
    %v148 = vld [vmem:[#allocation6 + $0x20] sm:$0xff]
    %v149 = vld [vmem:[#allocation6 + $0x28] sm:$0xff]
    %v150 = vld [vmem:[#allocation6 + $0x30] sm:$0xff]
    %v151 = vld [vmem:[#allocation6 + $0x38] sm:$0xff]
    %v152 = vld [vmem:[#allocation6 + $0x40] sm:$0xff]
    %v153 = vld [vmem:[#allocation6 + $0x48] sm:$0xff]
    %v154 = vld [vmem:[#allocation6 + $0x50] sm:$0xff]
    %v155 = vld [vmem:[#allocation6 + $0x58] sm:$0xff]
    %v156 = vld [vmem:[#allocation6 + $0x60] sm:$0xff]
    %v157 = vld [vmem:[#allocation6 + $0x68] sm:$0xff]
    %v158 = vld [vmem:[#allocation6 + $0x70] sm:$0xff]
    %v159 = vld [vmem:[#allocation6 + $0x78] sm:$0xff]
    %v160 = vlaneseq
    %v161 = vshrl.u32 %v160, 7
    %v162 = vsub.s32 0, %v161
    %v163 = vrot.slane %v58, %v162
    %164 = vmatprep.subr.mxu0 0.0
    %165 = vmatpush1.msra.mxu0 %v159
    %166 = vmatprep.subr.mxu0 0.0
    %167 = vmatpush1.msra.mxu0 %v158
    %168 = vmatprep.subr.mxu0 0.0
    %169 = vmatpush1.msra.mxu0 %v157
    %170 = vmatprep.subr.mxu0 0.0
    %171 = vmatpush1.msra.mxu0 %v156
    %172 = vmatprep.subr.mxu0 0.0
    %173 = vmatpush1.msra.mxu0 %v155
    %174 = vmatprep.subr.mxu0 0.0
    %175 = vmatpush1.msra.mxu0 %v154
    %176 = vmatprep.subr.mxu0 0.0
    %177 = vmatpush1.msra.mxu0 %v153
    %178 = vmatprep.subr.mxu0 0.0
    %179 = vmatpush1.msra.mxu0 %v152
    %180 = vmatprep.subr.mxu0 0.0
    %181 = vmatpush1.msra.mxu0 %v151
    %182 = vmatprep.subr.mxu0 0.0
    %183 = vmatpush1.msra.mxu0 %v150
    %184 = vmatprep.subr.mxu0 0.0
    %185 = vmatpush1.msra.mxu0 %v149
    %186 = vmatprep.subr.mxu0 0.0
    %187 = vmatpush1.msra.mxu0 %v148
    %188 = vmatprep.subr.mxu0 0.0
    %189 = vmatpush1.msra.mxu0 %v147
    %190 = vmatprep.subr.mxu0 0.0
    %191 = vmatpush1.msra.mxu0 %v146
    %192 = vmatprep.subr.mxu0 0.0
    %193 = vmatpush1.msra.mxu0 %v145
    %194 = vmatprep.subr.mxu0 0.0
    %195 = vmatpush1.msra.mxu0 %v144
    %196 = vmatprep.subr.mxu0 0.0
    %197 = vmatpush2.msra.mxu0 0.0
    %198 = vmatprep.subr.mxu0 0.0
    %199 = vmatpush2.msra.mxu0 0.0
    %200 = vmatprep.subr.mxu0 0.0
    %201 = vmatpush2.msra.mxu0 0.0
    %202 = vmatprep.subr.mxu0 0.0
    %203 = vmatpush2.msra.mxu0 0.0
    %204 = vmatprep.subr.mxu0 0.0
    %205 = vmatpush2.msra.mxu0 0.0
    %206 = vmatprep.subr.mxu0 0.0
    %207 = vmatpush2.msra.mxu0 0.0
    %208 = vmatprep.subr.mxu0 0.0
    %209 = vmatpush2.msra.mxu0 0.0
    %210 = vmatprep.subr.mxu0 0.0
    %211 = vmatpush2.msra.mxu0 0.0
    %212 = vmatprep.subr.mxu0 0.0
    %213 = vmatpush2.msra.mxu0 0.0
    %214 = vmatprep.subr.mxu0 0.0
    %215 = vmatpush2.msra.mxu0 0.0
    %216 = vmatprep.subr.mxu0 0.0
    %217 = vmatpush2.msra.mxu0 0.0
    %218 = vmatprep.subr.mxu0 0.0
    %219 = vmatpush2.msra.mxu0 0.0
    %220 = vmatprep.subr.mxu0 0.0
    %221 = vmatpush2.msra.mxu0 0.0
    %222 = vmatprep.subr.mxu0 0.0
    %223 = vmatpush2.msra.mxu0 0.0
    %224 = vmatprep.subr.mxu0 0.0
    %225 = vmatpush2.msra.mxu0 0.0
    %226 = vmatprep.subr.mxu0 0.0
    %227 = vmatpush2.msra.mxu0 0.0
    %228 = vmatprep.mubr.f32.mxu0 0.0
    %229 = vmatmul.mubr.f32.gmra.mxu0 %v143
    %v230 = vpop.f32.mrf.mxu0
    %v231 = vadd.f32 %v163, %v230
    %v232 = vpop.f32.mrf.mxu0
    %233 = vdwg.mxu0
    %v234 = vmax.f32 %v231, 0.0
    %v235 = vlaneseq
    %v236 = vshrl.u32 %v235, 7
    %v237 = vsub.s32 0, %v236
    %v238 = vrot.slane %v59, %v237
    %v239 = vmul.f32 %v234, %v238
    %240 = vadd.xlane.f32.xlu0 %v239
    %v241 = vpop.xlane.xlu0 %240
    %v242 = vlaneseq
    %v243 = vshrl.u32 %v242, 7
    %v244 = vsub.s32 0, %v243
    %v245 = vrot.slane %v60, %v244
    %v246 = vadd.f32 %v241, %v245
    %vm247 = vcmask 7168
    %248 = vst.msk [vmem:[%s4] sm:$0xff] %vm247, %v246
    // Predicated region
    $region30: #{tpu_custom_call.1} parent=1 // pred_check
      _
    $region31: #{tpu_custom_call.1} parent=1 // pred_check_branch
      %250 = sbr.rel (0) target = $region33
    $region32: #{tpu_custom_call.1} parent=1 // pred_region
      _
    $region33: #{tpu_custom_call.1} parent=1 // pred_fallthru
      _
    // Predicated region
    $region34: #{tpu_custom_call.1} parent=1 // pred_check
      _
    $region35: #{tpu_custom_call.1} parent=1 // pred_check_branch
      %252 = sbr.rel (0) target = $region37
    $region36: #{tpu_custom_call.1} parent=1 // pred_region
      _
    $region37: #{tpu_custom_call.1} parent=1 // pred_fallthru
      _
    %253 = vsyncpa [#allocation3], 1
    %254 = vsyncpa [#allocation5], 1

</llo_original>
